<compile_context>
chip_gen: v7x
topology: tpu7x:2x2x1
jax: 0.10.0
libtpu: 0.0.40
codegen_flags: <defaults>
</compile_context>

<pallas_src>
import jax
import jax.numpy as jnp
from jax.experimental import pallas as pl
from jax.experimental.pallas import tpu as pltpu


def _round_up(x, m):
    return ((x + m - 1) // m) * m


def _landmark_loss_kernel(out_ref, tgt_ref, label_ref, total_ref, keep_ref):
    """out_ref/tgt_ref: (D, TILE_N); label_ref: (1, TILE_N); outputs: (1, 8, 128)."""
    out = out_ref[...].astype(jnp.float32)          # upcast only if inputs are bf16
    tgt = tgt_ref[...].astype(jnp.float32)
    diff = out - tgt                                # (D, TILE_N)

    # Per-sample squared error: sublane (D) reduce first -> (1, TILE_N).
    per_sample = jnp.sum(diff * diff, axis=0, keepdims=True)

    # valid mask in the label's native dtype, cast once.
    valid = (label_ref[...] == -2).astype(jnp.float32)   # (1, TILE_N)

    # Masked partial reductions (one mask-multiply per sample, not per element).
    ssq = jnp.sum(per_sample * valid)               # scalar partial sum of squares
    cnt = jnp.sum(valid)                            # scalar partial keep count

    # Lane-dense partial outputs (one (8,128) slab per grid step -> unmasked vst).
    total_ref[...] = jnp.full(total_ref.shape, ssq, dtype=jnp.float32)
    keep_ref[...] = jnp.full(keep_ref.shape, cnt, dtype=jnp.float32)


def landmark_loss(landmark_out, landmark_target, label):
    """landmark_out, landmark_target: (N, D) float; label: (N,) or (N, 1) int/float."""
    n, d = landmark_out.shape

    # Lane-dense layout: batch on lanes, D on sublanes.
    out_t = jnp.transpose(landmark_out)             # (D, N)
    tgt_t = jnp.transpose(landmark_target)          # (D, N)
    label_row = jnp.reshape(label, (1, n))          # keep original dtype

    # Tile the batch (lane) axis.  32768 lanes * D(=10->16 sublanes) * 4B
    # ~= 1.25 MiB real data per f32 input block; big tiles amortize the
    # ~0.35 us per-grid-step overhead while staying far below VMEM limits.
    tile_n = min(_round_up(n, 128), 32768)
    n_pad = _round_up(n, tile_n)
    if n_pad != n:
        pad = n_pad - n
        out_t = jnp.pad(out_t, ((0, 0), (0, pad)))
        tgt_t = jnp.pad(tgt_t, ((0, 0), (0, pad)))
        # Pad labels with 0 (!= -2) so padded columns contribute nothing.
        label_row = jnp.pad(label_row, ((0, 0), (0, pad)))

    grid = (n_pad // tile_n,)
    g = grid[0]

    totals, keeps = pl.pallas_call(
        _landmark_loss_kernel,
        out_shape=(
            jax.ShapeDtypeStruct((g, 8, 128), jnp.float32),
            jax.ShapeDtypeStruct((g, 8, 128), jnp.float32),
        ),
        grid_spec=pltpu.PrefetchScalarGridSpec(
            num_scalar_prefetch=0,
            grid=grid,
            in_specs=[
                pl.BlockSpec((d, tile_n), lambda i: (0, i)),
                pl.BlockSpec((d, tile_n), lambda i: (0, i)),
                pl.BlockSpec((1, tile_n), lambda i: (0, i)),
            ],
            out_specs=(
                pl.BlockSpec((1, 8, 128), lambda i: (i, 0, 0)),
                pl.BlockSpec((1, 8, 128), lambda i: (i, 0, 0)),
            ),
        ),
        compiler_params=pltpu.CompilerParams(
            # Independent per-block partials -> parallel (splits across the two
            # TensorCores on v7x; harmless on v5e/v6e).
            dimension_semantics=("parallel",),
            # ~10 MiB of double-buffered blocks at tile_n=32768; raise the
            # scoped-VMEM limit above the v5e default (16 MiB) for headroom.
            vmem_limit_bytes=32 * 1024 * 1024,
        ),
    )(out_t, tgt_t, label_row)

    total = jnp.sum(totals[:, 0, 0])
    keep = jnp.sum(keeps[:, 0, 0])
    # keep == 0 -> 0/0 = NaN, matching torch.mean of an empty topk.
    return total / keep


def _reference(landmark_out, landmark_target, label):
    # Pure-JAX reference mirroring the torch code (keep_ratio = 1.0).
    valid = (jnp.reshape(label, (-1,)) == -2).astype(jnp.float32)
    diff = landmark_out.astype(jnp.float32) - landmark_target.astype(jnp.float32)
    loss = jnp.sum(diff * diff, axis=1) * valid
    keep = jnp.sum(valid)
    return jnp.sum(loss) / keep


if __name__ == "__main__":
    key = jax.random.PRNGKey(0)
    k1, k2, k3, k4, k5 = jax.random.split(key, 5)

    # --- small MTCNN-sized case: 5 landmarks * (x, y) = 10 values per sample ---
    N, D = 8, 10
    landmark_out = jax.random.normal(k1, (N, D), dtype=jnp.float32)
    landmark_target = jax.random.normal(k2, (N, D), dtype=jnp.float32)
    # label: -2 marks landmark samples; others (-1/0/1) are ignored by this loss.
    label = jnp.array([-2, 1, -2, 0, -1, -2, 1, -2], dtype=jnp.int32)

    loss = landmark_loss(landmark_out, landmark_target, label)
    jax.block_until_ready(loss)
    ref = _reference(landmark_out, landmark_target, label)
    assert jnp.allclose(loss, ref, rtol=1e-5, atol=1e-5), (loss, ref)

    # --- larger case exercising the tiled / multi-block grid path ---
    N2 = 70000
    big_out = jax.random.normal(k3, (N2, D), dtype=jnp.float32)
    big_tgt = jax.random.normal(k4, (N2, D), dtype=jnp.float32)
    big_label = jax.random.randint(k5, (N2,), minval=-2, maxval=2, dtype=jnp.int32)

    loss2 = landmark_loss(big_out, big_tgt, big_label)
    jax.block_until_ready(loss2)
    ref2 = _reference(big_out, big_tgt, big_label)
    assert jnp.allclose(loss2, ref2, rtol=1e-4, atol=1e-4), (loss2, ref2)

    print("KERNEL_OK")
</pallas_src>

<mosaic_0001>
module attributes {stable_mosaic.version = 11 : i64} {
  func.func @_landmark_loss_kernel(%arg0: i32, %arg1: memref<10x128xf32, #tpu.memory_space<vmem>>, %arg2: memref<10x128xf32, #tpu.memory_space<vmem>>, %arg3: memref<1x128xi32, #tpu.memory_space<vmem>>, %arg4: memref<1x8x128xf32, #tpu.memory_space<vmem>>, %arg5: memref<1x8x128xf32, #tpu.memory_space<vmem>>) attributes {dimension_semantics = [#tpu.dimension_semantics<parallel>], iteration_bounds = array<i64: 1>, scalar_prefetch = 0 : i64, scratch_operands = 0 : i64, tpu.core_type = #tpu.core_type<tc>, window_params = [{transform_indices = @transform_0, window_bounds = array<i64: 10, 128>}, {transform_indices = @transform_1, window_bounds = array<i64: 10, 128>}, {transform_indices = @transform_2, window_bounds = array<i64: 1, 128>}, {transform_indices = @transform_3, window_bounds = array<i64: 1, 8, 128>}, {transform_indices = @transform_4, window_bounds = array<i64: 1, 8, 128>}]} {
    %c0 = arith.constant 0 : index
    %c0_0 = arith.constant 0 : index
    %0 = vector.load %arg1[%c0, %c0_0] : memref<10x128xf32, #tpu.memory_space<vmem>>, vector<10x128xf32>
    %c0_1 = arith.constant 0 : index
    %c0_2 = arith.constant 0 : index
    %1 = vector.load %arg2[%c0_1, %c0_2] : memref<10x128xf32, #tpu.memory_space<vmem>>, vector<10x128xf32>
    %2 = arith.subf %0, %1 : vector<10x128xf32>
    %3 = arith.mulf %2, %2 : vector<10x128xf32>
    %cst = arith.constant dense<0.000000e+00> : vector<128xf32>
    %4 = vector.multi_reduction <add>, %3, %cst [0] : vector<10x128xf32> to vector<128xf32>
    %5 = vector.shape_cast %4 : vector<128xf32> to vector<1x128xf32>
    %c0_3 = arith.constant 0 : index
    %c0_4 = arith.constant 0 : index
    %6 = vector.load %arg3[%c0_3, %c0_4] : memref<1x128xi32, #tpu.memory_space<vmem>>, vector<1x128xi32>
    %c-2_i32 = arith.constant -2 : i32
    %7 = vector.broadcast %c-2_i32 : i32 to vector<1x128xi32>
    %8 = arith.cmpi eq, %6, %7 : vector<1x128xi32>
    %9 = arith.extui %8 : vector<1x128xi1> to vector<1x128xi32>
    %10 = arith.sitofp %9 : vector<1x128xi32> to vector<1x128xf32>
    %11 = arith.mulf %5, %10 : vector<1x128xf32>
    %12 = vector.shape_cast %11 : vector<1x128xf32> to vector<1x1x128xf32>
    %cst_5 = arith.constant dense<0.000000e+00> : vector<1xf32>
    %13 = vector.multi_reduction <add>, %12, %cst_5 [1, 2] : vector<1x1x128xf32> to vector<1xf32>
    %14 = vector.shape_cast %13 : vector<1xf32> to vector<1x1x1xf32>
    %15 = vector.extract %14[0, 0, 0] : f32 from vector<1x1x1xf32>
    %16 = vector.shape_cast %10 : vector<1x128xf32> to vector<1x1x128xf32>
    %cst_6 = arith.constant dense<0.000000e+00> : vector<1xf32>
    %17 = vector.multi_reduction <add>, %16, %cst_6 [1, 2] : vector<1x1x128xf32> to vector<1xf32>
    %18 = vector.shape_cast %17 : vector<1xf32> to vector<1x1x1xf32>
    %19 = vector.extract %18[0, 0, 0] : f32 from vector<1x1x1xf32>
    %20 = vector.broadcast %15 : f32 to vector<1x8x128xf32>
    %c0_7 = arith.constant 0 : index
    %c0_8 = arith.constant 0 : index
    %c0_9 = arith.constant 0 : index
    %21 = vector.load %arg4[%c0_7, %c0_8, %c0_9] : memref<1x8x128xf32, #tpu.memory_space<vmem>>, vector<1x8x128xf32>
    tpu.vector_store %arg4[%c0_7, %c0_8, %c0_9], %20 {strides = array<i32>} : memref<1x8x128xf32, #tpu.memory_space<vmem>>, vector<1x8x128xf32>,
    %22 = vector.broadcast %19 : f32 to vector<1x8x128xf32>
    %c0_10 = arith.constant 0 : index
    %c0_11 = arith.constant 0 : index
    %c0_12 = arith.constant 0 : index
    %23 = vector.load %arg5[%c0_10, %c0_11, %c0_12] : memref<1x8x128xf32, #tpu.memory_space<vmem>>, vector<1x8x128xf32>
    tpu.vector_store %arg5[%c0_10, %c0_11, %c0_12], %22 {strides = array<i32>} : memref<1x8x128xf32, #tpu.memory_space<vmem>>, vector<1x8x128xf32>,
    return
  }
  func.func @transform_0(%arg0: i32) -> (i32, i32) {
    %c0_i32 = arith.constant 0 : i32
    %c0_i32_0 = arith.constant 0 : i32
    return %c0_i32, %arg0 : i32, i32
  }
  func.func @transform_1(%arg0: i32) -> (i32, i32) {
    %c0_i32 = arith.constant 0 : i32
    %c0_i32_0 = arith.constant 0 : i32
    return %c0_i32, %arg0 : i32, i32
  }
  func.func @transform_2(%arg0: i32) -> (i32, i32) {
    %c0_i32 = arith.constant 0 : i32
    %c0_i32_0 = arith.constant 0 : i32
    return %c0_i32, %arg0 : i32, i32
  }
  func.func @transform_3(%arg0: i32) -> (i32, i32, i32) {
    %c0_i32 = arith.constant 0 : i32
    %c0_i32_0 = arith.constant 0 : i32
    %c0_i32_1 = arith.constant 0 : i32
    return %arg0, %c0_i32, %c0_i32_0 : i32, i32, i32
  }
  func.func @transform_4(%arg0: i32) -> (i32, i32, i32) {
    %c0_i32 = arith.constant 0 : i32
    %c0_i32_0 = arith.constant 0 : i32
    %c0_i32_1 = arith.constant 0 : i32
    return %arg0, %c0_i32, %c0_i32_0 : i32, i32, i32
  }
}

</mosaic_0001>

<llo_original>
// kernel: tpu_custom_call.1
$region0: #{tpu_custom_call.1}
  #allocation0 [shape = 'u32[]', space=smem, size = 0x4, offset = 0x4, fixed_abs, tag = 'smem constant byte address 0x4 - core index']
  #allocation1 [shape = 'u32[144,128]{1,0:T(1,128)}', space=vmem, size = 0x12000, scoped, tag = 'internal scratch']
  %s0 = inlined_call_operand.hbm [shape: f32[10,128], index: 0, kind: input, shape index: {}]
  %s1 = inlined_call_operand.hbm [shape: f32[10,128], index: 1, kind: input, shape index: {}]
  %s2 = inlined_call_operand.vmem [shape: s32[1,128], index: 2, kind: input, shape index: {}]
  %s3 = inlined_call_operand.hbm [shape: f32[1,8,128], index: 3, kind: output, shape index: {0}]
  %s4 = inlined_call_operand.hbm [shape: f32[1,8,128], index: 4, kind: output, shape index: {1}]
  %5 = xla_tuple %s3, %s4
  %s6 = sld [smem:[#allocation0]]
  $region38: #{tpu_custom_call.1} parent=0
    _
  %s8 = ssub.s32 1, %s6
  %s9 = scalar_select 0, %s8, %s6
  $region1: #{tpu_custom_call.1} parent=0
    #allocation2 [shape = 'u8[8192]{0}', space=vmem, size = 0x2000, scoped, tag = 'input window, operand 0, single buffered']
    #allocation3 [shape = 's32[1]{0}', space=sflag, size = 0x4, scoped, tag = 'scoped memory for tpu_custom_call.1']
    #allocation4 [shape = 's32[1]{0}', space=sflag, size = 0x4, scoped, tag = 'scoped memory for tpu_custom_call.1']
    #allocation5 [shape = 'u8[8192]{0}', space=vmem, size = 0x2000, scoped, tag = 'input window, operand 1, single buffered']
    #allocation6 [shape = 's32[1]{0}', space=sflag, size = 0x4, scoped, tag = 'scoped memory for tpu_custom_call.1']
    #allocation7 [shape = 'u8[4096]{0}', space=vmem, size = 0x1000, scoped, tag = 'output window, operand 0, single buffered']
    #allocation8 [shape = 'u8[4096]{0}', space=vmem, size = 0x1000, scoped, tag = 'output window, operand 1, single buffered']
    #allocation9 [shape = 's32[1]{0}', space=sflag, size = 0x4, scoped, tag = 'scoped memory for tpu_custom_call.1']
    %10 = vsyncpa [#allocation3], 0
    %11 = vsyncpa [#allocation6], 0
    %12 = vsyncpa [#allocation4], 0
    %13 = vsyncpa [#allocation9], 0
    // Predicated region
    $region2: #{tpu_custom_call.1} parent=1 // pred_check
      _
    $region3: #{tpu_custom_call.1} parent=1 // pred_check_branch
      %15 = sbr.rel (0) target = $region5
    $region4: #{tpu_custom_call.1} parent=1 // pred_region
      %s17 = ssub.s32 256, 256
      %18 = vsyncadd [#allocation3], %s17
      %s19 = sshll.u32 [#allocation2], 4
      %s20 = int_to_ptr.vmem [resolvable:$true] %s19
      %25 = dma.hbm_to_vmem [thread:$0]  %s0, 256, %s20, [#allocation3], 128, 128, 8
    $region5: #{tpu_custom_call.1} parent=1 // pred_fallthru
      _
    // Predicated region
    $region6: #{tpu_custom_call.1} parent=1 // pred_check
      _
    $region7: #{tpu_custom_call.1} parent=1 // pred_check_branch
      %27 = sbr.rel (0) target = $region9
    $region8: #{tpu_custom_call.1} parent=1 // pred_region
      %s29 = ssub.s32 256, 256
      %30 = vsyncadd [#allocation6], %s29
      %s31 = sshll.u32 [#allocation5], 4
      %s32 = int_to_ptr.vmem [resolvable:$true] %s31
      %37 = dma.hbm_to_vmem [thread:$0]  %s1, 256, %s32, [#allocation6], 128, 128, 8
    $region9: #{tpu_custom_call.1} parent=1 // pred_fallthru
      _
    // Predicated region
    $region10: #{tpu_custom_call.1} parent=1 // pred_check
      _
    $region11: #{tpu_custom_call.1} parent=1 // pred_check_branch
      %39 = sbr.rel (0) target = $region13
    $region12: #{tpu_custom_call.1} parent=1 // pred_region
      _
    $region13: #{tpu_custom_call.1} parent=1 // pred_fallthru
      _
    // Predicated region
    $region14: #{tpu_custom_call.1} parent=1 // pred_check
      _
    $region15: #{tpu_custom_call.1} parent=1 // pred_check_branch
      %41 = sbr.rel (0) target = $region17
    $region16: #{tpu_custom_call.1} parent=1 // pred_region
      %42 = dma.done [#allocation3], 256
    $region17: #{tpu_custom_call.1} parent=1 // pred_fallthru
      _
    // Predicated region
    $region18: #{tpu_custom_call.1} parent=1 // pred_check
      _
    $region19: #{tpu_custom_call.1} parent=1 // pred_check_branch
      %44 = sbr.rel (0) target = $region21
    $region20: #{tpu_custom_call.1} parent=1 // pred_region
      %45 = dma.done [#allocation6], 256
    $region21: #{tpu_custom_call.1} parent=1 // pred_fallthru
      _
    %v46 = vld [vmem:[#allocation2] sm:$0xff]
    %v47 = vld [vmem:[#allocation2 + $0x8] sm:$0x3]
    %v48 = vld [vmem:[#allocation5] sm:$0xff]
    %v49 = vld [vmem:[#allocation5 + $0x8] sm:$0x3]
    %v50 = vsub.f32 %v46, %v48
    %v51 = vsub.f32 %v47, %v49
    %v52 = vmul.f32 %v50, %v50
    %v53 = vmul.f32 %v51, %v51
    %vm54 = vcmask 1041408
    %v55 = vsel %vm54, %v53, 0.0
    %v56 = vadd.f32 %v52, %v55
    %v57 = vrot.slane %v56, 4
    %v58 = vadd.f32 %v56, %v57
    %v59 = vrot.slane %v58, 2
    %v60 = vadd.f32 %v58, %v59
    %v61 = vrot.slane %v60, 1
    %v62 = vadd.f32 %v60, %v61
    %v63 = vld [vmem:[%s2] sm:$0x1]
    %vm64 = vcmp.eq.s32.totalorder %v63, 4294967294
    %v65 = vsel %vm64, 1, 0
    %v66 = vcvt.s32.f32 %v65
    %v67 = vmul.f32 %v62, %v66
    %vm68 = vcmask 1040384
    %v69 = vsel %vm68, %v67, 0.0
    %70 = vadd.xlane.f32.xlu0 %v69
    %v71 = vpop.xlane.xlu0 %70
    %v72 = vrot.slane %v71, 4
    %v73 = vadd.f32 %v71, %v72
    %v74 = vrot.slane %v73, 2
    %v75 = vadd.f32 %v73, %v74
    %v76 = vrot.slane %v75, 1
    %v77 = vadd.f32 %v75, %v76
    %s78 = vtos %v77
    %v79 = vsel %vm68, %v66, 0.0
    %80 = vadd.xlane.f32.xlu0 %v79
    %v81 = vpop.xlane.xlu0 %80
    %v82 = vrot.slane %v81, 4
    %v83 = vadd.f32 %v81, %v82
    %v84 = vrot.slane %v83, 2
    %v85 = vadd.f32 %v83, %v84
    %v86 = vrot.slane %v85, 1
    %v87 = vadd.f32 %v85, %v86
    %s88 = vtos %v87
    %v89 = vstv %s78
    %90 = vst [vmem:[#allocation7] sm:$0xff] %v89
    %v91 = vstv %s88
    %92 = vst [vmem:[#allocation8] sm:$0xff] %v91
    // Predicated region
    $region22: #{tpu_custom_call.1} parent=1 // pred_check
      _
    $region23: #{tpu_custom_call.1} parent=1 // pred_check_branch
      %94 = sbr.rel (0) target = $region25
    $region24: #{tpu_custom_call.1} parent=1 // pred_region
      %s96 = ssub.s32 128, 128
      %97 = vsyncadd [#allocation4], %s96
      %s99 = sshll.u32 [#allocation7], 4
      %s100 = int_to_ptr.vmem [resolvable:$true] %s99
      %102 = dma.vmem_to_hbm [thread:$0]  %s100, 128, %s3, [#allocation4]
    $region25: #{tpu_custom_call.1} parent=1 // pred_fallthru
      _
    // Predicated region
    $region26: #{tpu_custom_call.1} parent=1 // pred_check
      _
    $region27: #{tpu_custom_call.1} parent=1 // pred_check_branch
      %104 = sbr.rel (0) target = $region29
    $region28: #{tpu_custom_call.1} parent=1 // pred_region
      %s106 = ssub.s32 128, 128
      %107 = vsyncadd [#allocation9], %s106
      %s109 = sshll.u32 [#allocation8], 4
      %s110 = int_to_ptr.vmem [resolvable:$true] %s109
      %112 = dma.vmem_to_hbm [thread:$0]  %s110, 128, %s4, [#allocation9]
    $region29: #{tpu_custom_call.1} parent=1 // pred_fallthru
      _
    // Predicated region
    $region30: #{tpu_custom_call.1} parent=1 // pred_check
      _
    $region31: #{tpu_custom_call.1} parent=1 // pred_check_branch
      %114 = sbr.rel (0) target = $region33
    $region32: #{tpu_custom_call.1} parent=1 // pred_region
      %115 = dma.done [#allocation4], 128
    $region33: #{tpu_custom_call.1} parent=1 // pred_fallthru
      _
    // Predicated region
    $region34: #{tpu_custom_call.1} parent=1 // pred_check
      _
    $region35: #{tpu_custom_call.1} parent=1 // pred_check_branch
      %117 = sbr.rel (0) target = $region37
    $region36: #{tpu_custom_call.1} parent=1 // pred_region
      %118 = dma.done [#allocation9], 128
    $region37: #{tpu_custom_call.1} parent=1 // pred_fallthru
      _
    %119 = vsyncpa [#allocation3], 1
    %120 = vsyncpa [#allocation6], 1
    %121 = vsyncpa [#allocation4], 1
    %122 = vsyncpa [#allocation9], 1

</llo_original>
